<compile_context>
chip_gen: v5e
topology: v5e:2x2
jax: 0.10.0
libtpu: 0.0.40
codegen_flags: <defaults>
</compile_context>

<pallas_src>
import jax
import jax.numpy as jnp
from jax.experimental import pallas as pl
from jax.experimental.pallas import tpu as pltpu


def _conv_fold_kernel(x_ref, w_ref, o_ref):
    # x_ref: (K_pad, tile_m) bf16  -- im2col block, M on lanes (lane-dense)
    # w_ref: (Cout_pad, K_pad) bf16 -- weights with bias folded into spare K row
    # o_ref: (Cout_pad, tile_m) f32 -- lane-dense, unmasked stores
    o_ref[...] = jnp.dot(w_ref[...], x_ref[...],
                         preferred_element_type=jnp.float32)


def _circ_pad(x, axis, pad):
    up = jax.lax.slice_in_dim(x, 0, pad, axis=axis)
    down = jax.lax.slice_in_dim(x, x.shape[axis] - pad, x.shape[axis], axis=axis)
    return jnp.concatenate([down, x, up], axis=axis)


def _pick_tile_m(m):
    # >= 4 grid steps so each v7x TensorCore gets >= 2 pipelined steps, tiles
    # stay lane-dense (multiple of 128), and the cap keeps double-buffered
    # blocks tiny even under v5e's 16 MiB default scoped VMEM.
    t = max(512, pl.next_power_of_2(max(1, m // 4)))
    return min(t, 4096)


def circular_conv3d(img, weight, bias, kernel_size, *, tile_m=None):
    """Forward pass of `circular_conv`. img: (N, Cin, D, H, W) float32."""
    k = kernel_size
    pad = k - 1
    n, cin, d, h, w_sz = img.shape
    cout = weight.shape[0]

    # --- circular padding, exactly as the PyTorch forward does it (glue) ---
    xp = _circ_pad(img, 2, pad)
    xp = _circ_pad(xp, 3, pad)
    xp = _circ_pad(xp, 4, pad)                 # (N, Cin, D+2p, H+2p, W+2p)

    do, ho, wo = d + pad, h + pad, w_sz + pad  # VALID conv output dims
    # channels-last + bf16 once, before tap extraction (halves duplicated bytes)
    xp = jnp.transpose(xp, (0, 2, 3, 4, 1)).astype(jnp.bfloat16)

    # --- transposed im2col: K on sublanes, M = N*Do*Ho*Wo on lanes ---
    patches = []
    for kd in range(k):
        for kh in range(k):
            for kw in range(k):
                patches.append(xp[:, kd:kd + do, kh:kh + ho, kw:kw + wo, :])
    t_taps = k ** 3
    k_dim = t_taps * cin                       # contraction length (e.g. 108)
    m = n * do * ho * wo

    x_taps = jnp.stack(patches, axis=0)                 # (taps, N, Do, Ho, Wo, Cin)
    x_taps = jnp.transpose(x_taps, (0, 5, 1, 2, 3, 4))  # (taps, Cin, N, Do, Ho, Wo)
    # K ordering: (kd, kh, kw) major, Cin fastest — must match w_colT below.
    x_colT = x_taps.reshape(k_dim, m)
    # Bias fold: ones row at K index k_dim (bias lives in w_colT column k_dim).
    x_colT = jnp.concatenate([x_colT, jnp.ones((1, m), jnp.bfloat16)], axis=0)

    if tile_m is None:
        tile_m = _pick_tile_m(m)

    # Pad K to a lane-dense 128 multiple; Cout only to the bf16 sublane multiple
    # (16); M to the tile size (lane axis, multiple of 128).
    k_pad = pl.cdiv(k_dim + 1, 128) * 128
    cout_pad = pl.cdiv(cout, 16) * 16
    m_pad = pl.cdiv(m, tile_m) * tile_m
    x_colT = jnp.pad(x_colT, ((0, k_pad - (k_dim + 1)), (0, m_pad - m)))

    # weight (Cout, Cin, kd, kh, kw) -> (Cout, kd, kh, kw, Cin) -> (Cout, K)
    w_colT = jnp.transpose(weight, (0, 2, 3, 4, 1)).reshape(cout, k_dim)
    w_colT = jnp.concatenate(
        [w_colT, bias.reshape(cout, 1).astype(w_colT.dtype)], axis=1)
    w_colT = jnp.pad(w_colT, ((0, cout_pad - cout), (0, k_pad - (k_dim + 1))))
    w_colT = w_colT.astype(jnp.bfloat16)       # (Cout_pad, K_pad), stays resident

    out_flat = pl.pallas_call(
        _conv_fold_kernel,
        out_shape=jax.ShapeDtypeStruct((cout_pad, m_pad), jnp.float32),
        grid_spec=pltpu.PrefetchScalarGridSpec(
            num_scalar_prefetch=0,
            grid=(m_pad // tile_m,),
            in_specs=[
                pl.BlockSpec((k_pad, tile_m), lambda i: (0, i)),
                pl.BlockSpec((cout_pad, k_pad), lambda i: (0, 0)),
            ],
            out_specs=pl.BlockSpec((cout_pad, tile_m), lambda i: (0, i)),
        ),
        compiler_params=pltpu.CompilerParams(
            dimension_semantics=("parallel",)),
    )(x_colT, w_colT)

    # Cheap epilogue: only Cout rows of valid data are sliced / transposed.
    out = out_flat[:cout, :m].reshape(cout, n, do, ho, wo)
    return jnp.transpose(out, (1, 0, 2, 3, 4))  # back to NCDHW like PyTorch


if __name__ == "__main__":
    key = jax.random.PRNGKey(0)
    k_img, k_w, k_b = jax.random.split(key, 3)

    in_channel, out_channel, kernel_size = 4, 8, 3
    N, D, H, W = 2, 8, 8, 8

    img = jax.random.normal(k_img, (N, in_channel, D, H, W), jnp.float32)

    # Conv3d weight (Cout, Cin, k, k, k) with xavier_normal_ init (deterministic).
    fan_in = in_channel * kernel_size ** 3
    fan_out = out_channel * kernel_size ** 3
    std = (2.0 / (fan_in + fan_out)) ** 0.5
    weight = std * jax.random.normal(
        k_w, (out_channel, in_channel, kernel_size, kernel_size, kernel_size),
        jnp.float32)
    # Conv3d default bias init: U(-1/sqrt(fan_in), 1/sqrt(fan_in)).
    bound = 1.0 / (fan_in ** 0.5)
    bias = jax.random.uniform(k_b, (out_channel,), jnp.float32, -bound, bound)

    out = circular_conv3d(img, weight, bias, kernel_size)
    out = jax.block_until_ready(out)

    expected_shape = (N, out_channel,
                      D + kernel_size - 1, H + kernel_size - 1, W + kernel_size - 1)
    assert out.shape == expected_shape, (out.shape, expected_shape)

    # Reference: same math in plain JAX (circular pad + VALID Conv3d + bias), f32.
    pad = kernel_size - 1
    xp_ref = _circ_pad(_circ_pad(_circ_pad(img, 2, pad), 3, pad), 4, pad)
    ref = jax.lax.conv_general_dilated(
        xp_ref, weight, window_strides=(1, 1, 1), padding="VALID",
        dimension_numbers=("NCDHW", "OIDHW", "NCDHW"),
        precision=jax.lax.Precision.HIGHEST) + bias.reshape(1, -1, 1, 1, 1)
    err = float(jnp.max(jnp.abs(out - ref)))
    assert err < 2e-2, f"max abs error {err}"

    print("KERNEL_OK")
</pallas_src>

<mosaic_0001>
module attributes {stable_mosaic.version = 11 : i64} {
  func.func @_conv_fold_kernel(%arg0: i32, %arg1: memref<128x512xbf16, #tpu.memory_space<vmem>>, %arg2: memref<16x128xbf16, #tpu.memory_space<vmem>>, %arg3: memref<16x512xf32, #tpu.memory_space<vmem>>) attributes {dimension_semantics = [#tpu.dimension_semantics<parallel>], iteration_bounds = array<i64: 4>, scalar_prefetch = 0 : i64, scratch_operands = 0 : i64, tpu.core_type = #tpu.core_type<tc>, window_params = [{transform_indices = @transform_0, window_bounds = array<i64: 128, 512>}, {pipeline_mode = #tpu.pipeline_mode<synchronous>, transform_indices = @transform_1, window_bounds = array<i64: 16, 128>}, {transform_indices = @transform_2, window_bounds = array<i64: 16, 512>}]} {
    %c0 = arith.constant 0 : index
    %c0_0 = arith.constant 0 : index
    %0 = vector.load %arg2[%c0, %c0_0] : memref<16x128xbf16, #tpu.memory_space<vmem>>, vector<16x128xbf16>
    %c0_1 = arith.constant 0 : index
    %c0_2 = arith.constant 0 : index
    %1 = vector.load %arg1[%c0_1, %c0_2] : memref<128x512xbf16, #tpu.memory_space<vmem>>, vector<128x512xbf16>
    %cst = arith.constant dense<0.000000e+00> : vector<16x512xf32>
    %2 = tpu.matmul %0, %1, %cst {dimension_numbers = #tpu.dot_dimension_numbers<[1], [0], [0], [1], [0, 0, 1, 1], [], []>} : vector<16x128xbf16>, vector<128x512xbf16>, vector<16x512xf32> -> vector<16x512xf32>
    %c0_3 = arith.constant 0 : index
    %c0_4 = arith.constant 0 : index
    %3 = vector.load %arg3[%c0_3, %c0_4] : memref<16x512xf32, #tpu.memory_space<vmem>>, vector<16x512xf32>
    tpu.vector_store %arg3[%c0_3, %c0_4], %2 {strides = array<i32>} : memref<16x512xf32, #tpu.memory_space<vmem>>, vector<16x512xf32>,
    return
  }
  func.func @transform_0(%arg0: i32) -> (i32, i32) {
    %c0_i32 = arith.constant 0 : i32
    %c0_i32_0 = arith.constant 0 : i32
    return %c0_i32, %arg0 : i32, i32
  }
  func.func @transform_1(%arg0: i32) -> (i32, i32) {
    %c0_i32 = arith.constant 0 : i32
    %c0_i32_0 = arith.constant 0 : i32
    %c0_i32_1 = arith.constant 0 : i32
    return %c0_i32, %c0_i32_0 : i32, i32
  }
  func.func @transform_2(%arg0: i32) -> (i32, i32) {
    %c0_i32 = arith.constant 0 : i32
    %c0_i32_0 = arith.constant 0 : i32
    return %c0_i32, %arg0 : i32, i32
  }
}

</mosaic_0001>

<llo_original>
// kernel: tpu_custom_call.1
$region0: #{tpu_custom_call.1}
  #allocation0 [shape = 'u32[]', space=smem, size = 0x4, offset = 0x4, fixed_abs, tag = 'smem constant byte address 0x4 - core index']
  #allocation1 [shape = 'u32[72,128]{1,0:T(1,128)}', space=vmem, size = 0x9000, scoped, tag = 'internal scratch']
  %s0 = inlined_call_operand.hbm [shape: bf16[128,2048], index: 0, kind: input, shape index: {}]
  %s1 = inlined_call_operand.hbm [shape: bf16[16,128], index: 1, kind: input, shape index: {}]
  %s2 = inlined_call_operand.hbm [shape: f32[16,2048], index: 2, kind: output, shape index: {}]
  %s3 = sld [smem:[#allocation0]]
  $region49: #{tpu_custom_call.1} parent=0
    _
  %s5 = ssub.s32 1, %s3
  %s6 = scalar_select 0, %s5, %s3
  $region1: #{tpu_custom_call.1} parent=0
    #allocation2 [shape = 'u8[262144]{0}', space=vmem, size = 0x40000, scoped, tag = 'input window, operand 0']
    #allocation3 [shape = 's32[2]{0}', space=sflag, size = 0x8, scoped, tag = 'scoped memory for tpu_custom_call.1']
    #allocation4 [shape = 's32[2]{0}', space=sflag, size = 0x8, scoped, tag = 'scoped memory for tpu_custom_call.1']
    #allocation5 [shape = 'u8[4096]{0}', space=vmem, size = 0x1000, scoped, tag = 'input window, operand 1, single buffered']
    #allocation6 [shape = 's32[1]{0}', space=sflag, size = 0x4, scoped, tag = 'scoped memory for tpu_custom_call.1']
    #allocation7 [shape = 'u8[65536]{0}', space=vmem, size = 0x10000, scoped, tag = 'output window, operand 0']
    %7 = vsyncpa [#allocation3], 0
    %s8 = scalar_lea.sflag [#allocation3], 1
    %9 = vsyncpa %s8, 0
    %10 = vsyncpa [#allocation6], 0
    %11 = vsyncpa [#allocation4], 0
    %s12 = scalar_lea.sflag [#allocation4], 1
    %13 = vsyncpa %s12, 0
    loop: start=0, step=1, limit=6
    $region2: #{tpu_custom_call.1} parent=1 // loop_pre_header
      _
    $region3: #{tpu_custom_call.1} parent=1 // loop_header
      %s15 = sphi 0, %s19
      %p16 = scmp.ge.s32.totalorder %s15, 6
      %s25 = sphi 0, %s27
      %s28 = sphi 0, %s25
      %s29 = sphi 0, %s28
      %s45 = sphi 0, %s29
      %s49 = sphi 0, %s49
      %s51 = sphi 0, %s49
      %s52 = sphi 0, %s51
      %s66 = sphi 0, %s52
      %s72 = sphi 0, %s74
      %s75 = sphi 0, %s72
      %s76 = sphi 0, %s75
      %s92 = sphi 0, %s76
    $region4: #{tpu_custom_call.1} parent=1 // loop_header_branch
      %18 = sbr.rel (%p16) target = $region8
    $region5: #{tpu_custom_call.1} parent=1 // loop_body
      %s20 = ssub.s32 %s15, 1
      %s21 = ssub.s32 %s15, 2
      %s22 = sadd.s32 %s15, 1
      %s23 = ssub.s32 %s15, %s22
      %p24 = scmp.eq.s32.totalorder %s23, 0
      %s26 = sadd.s32 %s25, 1
      %s27 = scalar_select %p24, %s25, %s26
      %p30 = pneg %p24
      %p31 = scmp.eq.s32.totalorder %s15, 3
      %p32 = por %p30, %p31
      %p33 = scmp.ne.s32.totalorder %s25, %s28
      %p34 = scmp.eq.s32.totalorder %s15, 0
      %p35 = por %p33, %p34
      %p36 = scmp.ne.s32.totalorder %s25, %s28
      %p37 = scmp.eq.s32.totalorder %s20, 3
      %p38 = por %p36, %p37
      %p39 = scmp.ne.s32.totalorder %s28, %s29
      %p40 = scmp.eq.s32.totalorder %s20, 0
      %p41 = por %p39, %p40
      %p42 = scmp.ne.s32.totalorder %s28, %s29
      %p43 = scmp.eq.s32.totalorder %s21, 3
      %p44 = por %p42, %p43
      %p46 = scmp.ne.s32.totalorder %s29, %s45
      %p47 = scmp.eq.s32.totalorder %s21, 0
      %p48 = por %p46, %p47
      %s50 = sadd.s32 %s49, 1
      %p53 = scmp.eq.s32.totalorder %s15, 3
      %p54 = scmp.ne.s32.totalorder %s49, %s51
      %p55 = scmp.eq.s32.totalorder %s15, 0
      %p56 = por %p54, %p55
      %p57 = scmp.ne.s32.totalorder %s49, %s51
      %p58 = scmp.eq.s32.totalorder %s20, 3
      %p59 = por %p57, %p58
      %p60 = scmp.ne.s32.totalorder %s51, %s52
      %p61 = scmp.eq.s32.totalorder %s20, 0
      %p62 = por %p60, %p61
      %p63 = scmp.ne.s32.totalorder %s51, %s52
      %p64 = scmp.eq.s32.totalorder %s21, 3
      %p65 = por %p63, %p64
      %p67 = scmp.ne.s32.totalorder %s52, %s66
      %p68 = scmp.eq.s32.totalorder %s21, 0
      %p69 = por %p67, %p68
      %s70 = ssub.s32 %s15, %s22
      %p71 = scmp.eq.s32.totalorder %s70, 0
      %s73 = sadd.s32 %s72, 1
      %s74 = scalar_select %p71, %s72, %s73
      %p77 = pneg %p71
      %p78 = scmp.eq.s32.totalorder %s15, 3
      %p79 = por %p77, %p78
      %p80 = scmp.ne.s32.totalorder %s72, %s75
      %p81 = scmp.eq.s32.totalorder %s15, 0
      %p82 = por %p80, %p81
      %p83 = scmp.ne.s32.totalorder %s72, %s75
      %p84 = scmp.eq.s32.totalorder %s20, 3
      %p85 = por %p83, %p84
      %p86 = scmp.ne.s32.totalorder %s75, %s76
      %p87 = scmp.eq.s32.totalorder %s20, 0
      %p88 = por %p86, %p87
      %p89 = scmp.ne.s32.totalorder %s75, %s76
      %p90 = scmp.eq.s32.totalorder %s21, 3
      %p91 = por %p89, %p90
      %p93 = scmp.ne.s32.totalorder %s76, %s92
      %p94 = scmp.eq.s32.totalorder %s21, 0
      %p95 = por %p93, %p94
      %p96 = scmp.le.s32.totalorder 1, %s15
      %p97 = scmp.lt.s32.totalorder %s15, 5
      %p98 = pnand %p96, %p97
      %p99 = pneg %p98
      // Predicated region
      $region9: #{tpu_custom_call.1} parent=5 // pred_check
        _
      $region10: #{tpu_custom_call.1} parent=5 // pred_check_branch
        %101 = sbr.rel (%p98) target = $region12
      $region11: #{tpu_custom_call.1} parent=5 // pred_region
        %s102 = ssub.s32 %s15, 1
        // Predicated region
        $region13: #{tpu_custom_call.1} parent=11 // pred_check
          %p103 = pneg %p62
        $region14: #{tpu_custom_call.1} parent=11 // pred_check_branch
          %105 = sbr.rel (%p103) target = $region16
        $region15: #{tpu_custom_call.1} parent=11 // pred_region
          %107 = vsyncadd [#allocation6], 0
          %s108 = sshll.u32 %s1, 4
          %s109 = int_to_ptr.hbm [resolvable:$true] %s108
          %s110 = sshll.u32 [#allocation5], 4
          %s111 = int_to_ptr.vmem [resolvable:$true] %s110
          %116 = dma.hbm_to_vmem [thread:$0]  %s109, 128, %s111, [#allocation6], 64, 64, 4
        $region16: #{tpu_custom_call.1} parent=11 // pred_fallthru
          _
      $region12: #{tpu_custom_call.1} parent=5 // pred_fallthru
        _
      %p117 = scmp.lt.s32.totalorder %s15, 4
      // Predicated region
      $region17: #{tpu_custom_call.1} parent=5 // pred_check
        %p118 = pneg %p117
      $region18: #{tpu_custom_call.1} parent=5 // pred_check_branch
        %120 = sbr.rel (%p118) target = $region20
      $region19: #{tpu_custom_call.1} parent=5 // pred_region
        // Predicated region
        $region21: #{tpu_custom_call.1} parent=19 // pred_check
          %p121 = pneg %p35
        $region22: #{tpu_custom_call.1} parent=19 // pred_check_branch
          %123 = sbr.rel (%p121) target = $region24
        $region23: #{tpu_custom_call.1} parent=19 // pred_region
          %s124 = sand.u32 %s25, 1
          %s125 = scalar_lea.sflag [#allocation3], %s124
          %s126 = sand.u32 %s25, 1
          %s127 = smul.addr %s126, 256
          %s128 = scalar_lea.vmem [#allocation2], %s127
          %s129 = smul.u32 4, %s15
          %131 = vsyncadd %s125, 0
          %s132 = smul.addr %s129, 4
          %s133 = scalar_lea.hbm %s0, %s132
          %s134 = sshll.u32 %s133, 4
          %s135 = int_to_ptr.hbm [resolvable:$true] %s134
          %s136 = sshll.u32 %s128, 4
          %s137 = int_to_ptr.vmem [resolvable:$true] %s136
          %142 = dma.hbm_to_vmem [thread:$0]  %s135, 4096, %s137, %s125, 1024, 256, 16
        $region24: #{tpu_custom_call.1} parent=19 // pred_fallthru
          _
      $region20: #{tpu_custom_call.1} parent=5 // pred_fallthru
        _
      %p143 = scmp.le.s32.totalorder 1, %s15
      %p144 = scmp.lt.s32.totalorder %s15, 5
      %p145 = pnand %p143, %p144
      %p146 = pneg %p145
      // Predicated region
      $region25: #{tpu_custom_call.1} parent=5 // pred_check
        _
      $region26: #{tpu_custom_call.1} parent=5 // pred_check_branch
        %148 = sbr.rel (%p145) target = $region28
      $region27: #{tpu_custom_call.1} parent=5 // pred_region
        %s149 = ssub.s32 %s15, 1
        %s150 = sand.u32 %s28, 1
        %s151 = scalar_lea.sflag [#allocation3], %s150
        %s152 = sand.u32 %s28, 1
        %s153 = smul.addr %s152, 256
        %s154 = scalar_lea.vmem [#allocation2], %s153
        // Predicated region
        $region29: #{tpu_custom_call.1} parent=27 // pred_check
          %p155 = pneg %p41
        $region30: #{tpu_custom_call.1} parent=27 // pred_check_branch
          %157 = sbr.rel (%p155) target = $region32
        $region31: #{tpu_custom_call.1} parent=27 // pred_region
          %159 = dma.done %s151, 4096
        $region32: #{tpu_custom_call.1} parent=27 // pred_fallthru
          _
        // Predicated region
        $region33: #{tpu_custom_call.1} parent=27 // pred_check
          %p160 = pneg %p62
        $region34: #{tpu_custom_call.1} parent=27 // pred_check_branch
          %162 = sbr.rel (%p160) target = $region36
        $region35: #{tpu_custom_call.1} parent=27 // pred_region
          %164 = dma.done [#allocation6], 128
        $region36: #{tpu_custom_call.1} parent=27 // pred_fallthru
          _
        %s165 = sand.u32 %s28, 1
        %s166 = scalar_lea.sflag [#allocation3], %s165
        %s167 = sand.u32 %s28, 1
        %s168 = smul.addr %s167, 256
        %s169 = scalar_lea.vmem [#allocation2], %s168
        %p170 = pneg %p41
        %p171 = pneg %p38
        %p172 = pneg %p62
        %p173 = pneg %p59
        %p174 = pneg %p88
        %p175 = pneg %p85
        %s176 = sand.u32 %s75, 1
        %s177 = scalar_lea.sflag [#allocation4], %s176
        %s178 = sand.u32 %s75, 1
        %s179 = smul.addr %s178, 64
        %s180 = scalar_lea.vmem [#allocation7], %s179
        %s181 = smul.u32 4, %s20
        %s182 = smul.u32 4, %s20
        %v183 = vld [vmem:[#allocation5] sm:$0xf]
        %v184 = vld [vmem:[#allocation5 + $0x4] sm:$0xf]
        %v185 = vld [vmem:[%s154] sm:$0xff]
        %v186 = vld [vmem:[%s154 + $0x8] sm:$0xff]
        %v187 = vld [vmem:[%s154 + $0x10] sm:$0xff]
        %v188 = vld [vmem:[%s154 + $0x18] sm:$0xff]
        %v189 = vld [vmem:[%s154 + $0x20] sm:$0xff]
        %v190 = vld [vmem:[%s154 + $0x28] sm:$0xff]
        %v191 = vld [vmem:[%s154 + $0x30] sm:$0xff]
        %v192 = vld [vmem:[%s154 + $0x38] sm:$0xff]
        %v193 = vld [vmem:[%s154 + $0x40] sm:$0xff]
        %v194 = vld [vmem:[%s154 + $0x48] sm:$0xff]
        %v195 = vld [vmem:[%s154 + $0x50] sm:$0xff]
        %v196 = vld [vmem:[%s154 + $0x58] sm:$0xff]
        %v197 = vld [vmem:[%s154 + $0x60] sm:$0xff]
        %v198 = vld [vmem:[%s154 + $0x68] sm:$0xff]
        %v199 = vld [vmem:[%s154 + $0x70] sm:$0xff]
        %v200 = vld [vmem:[%s154 + $0x78] sm:$0xff]
        %v201 = vld [vmem:[%s154 + $0x80] sm:$0xff]
        %v202 = vld [vmem:[%s154 + $0x88] sm:$0xff]
        %v203 = vld [vmem:[%s154 + $0x90] sm:$0xff]
        %v204 = vld [vmem:[%s154 + $0x98] sm:$0xff]
        %v205 = vld [vmem:[%s154 + $0xa0] sm:$0xff]
        %v206 = vld [vmem:[%s154 + $0xa8] sm:$0xff]
        %v207 = vld [vmem:[%s154 + $0xb0] sm:$0xff]
        %v208 = vld [vmem:[%s154 + $0xb8] sm:$0xff]
        %v209 = vld [vmem:[%s154 + $0xc0] sm:$0xff]
        %v210 = vld [vmem:[%s154 + $0xc8] sm:$0xff]
        %v211 = vld [vmem:[%s154 + $0xd0] sm:$0xff]
        %v212 = vld [vmem:[%s154 + $0xd8] sm:$0xff]
        %v213 = vld [vmem:[%s154 + $0xe0] sm:$0xff]
        %v214 = vld [vmem:[%s154 + $0xe8] sm:$0xff]
        %v215 = vld [vmem:[%s154 + $0xf0] sm:$0xff]
        %v216 = vld [vmem:[%s154 + $0xf8] sm:$0xff]
        %v219 = vunpack.c.l.b16 %v183
        %v220 = vunpack.c.l.b16 %v184
        %v221 = vpack.c.b16 %v220, %v219
        %v255 = vunpack.c.l.b16 %v185
        %v256 = vunpack.c.h.b16 %v185
        %v257 = vunpack.c.l.b16 %v186
        %v258 = vunpack.c.h.b16 %v186
        %v259 = vunpack.c.l.b16 %v187
        %v260 = vunpack.c.h.b16 %v187
        %v261 = vunpack.c.l.b16 %v188
        %v262 = vunpack.c.h.b16 %v188
        %v263 = vunpack.c.l.b16 %v189
        %v264 = vunpack.c.h.b16 %v189
        %v265 = vunpack.c.l.b16 %v190
        %v266 = vunpack.c.h.b16 %v190
        %v267 = vunpack.c.l.b16 %v191
        %v268 = vunpack.c.h.b16 %v191
        %v269 = vunpack.c.l.b16 %v192
        %v270 = vunpack.c.h.b16 %v192
        %v271 = vunpack.c.l.b16 %v193
        %v272 = vunpack.c.h.b16 %v193
        %v273 = vunpack.c.l.b16 %v194
        %v274 = vunpack.c.h.b16 %v194
        %v275 = vunpack.c.l.b16 %v195
        %v276 = vunpack.c.h.b16 %v195
        %v277 = vunpack.c.l.b16 %v196
        %v278 = vunpack.c.h.b16 %v196
        %v279 = vunpack.c.l.b16 %v197
        %v280 = vunpack.c.h.b16 %v197
        %v281 = vunpack.c.l.b16 %v198
        %v282 = vunpack.c.h.b16 %v198
        %v283 = vunpack.c.l.b16 %v199
        %v284 = vunpack.c.h.b16 %v199
        %v285 = vunpack.c.l.b16 %v200
        %v286 = vunpack.c.h.b16 %v200
        %v287 = vunpack.c.l.b16 %v201
        %v288 = vunpack.c.h.b16 %v201
        %v289 = vunpack.c.l.b16 %v202
        %v290 = vunpack.c.h.b16 %v202
        %v291 = vunpack.c.l.b16 %v203
        %v292 = vunpack.c.h.b16 %v203
        %v293 = vunpack.c.l.b16 %v204
        %v294 = vunpack.c.h.b16 %v204
        %v295 = vunpack.c.l.b16 %v205
        %v296 = vunpack.c.h.b16 %v205
        %v297 = vunpack.c.l.b16 %v206
        %v298 = vunpack.c.h.b16 %v206
        %v299 = vunpack.c.l.b16 %v207
        %v300 = vunpack.c.h.b16 %v207
        %v301 = vunpack.c.l.b16 %v208
        %v302 = vunpack.c.h.b16 %v208
        %v303 = vunpack.c.l.b16 %v209
        %v304 = vunpack.c.h.b16 %v209
        %v305 = vunpack.c.l.b16 %v210
        %v306 = vunpack.c.h.b16 %v210
        %v307 = vunpack.c.l.b16 %v211
        %v308 = vunpack.c.h.b16 %v211
        %v309 = vunpack.c.l.b16 %v212
        %v310 = vunpack.c.h.b16 %v212
        %v311 = vunpack.c.l.b16 %v213
        %v312 = vunpack.c.h.b16 %v213
        %v313 = vunpack.c.l.b16 %v214
        %v314 = vunpack.c.h.b16 %v214
        %v315 = vunpack.c.l.b16 %v215
        %v316 = vunpack.c.h.b16 %v215
        %v317 = vunpack.c.l.b16 %v216
        %v318 = vunpack.c.h.b16 %v216
        %v319 = vpack.c.b16 %v259, %v255
        %v320 = vpack.c.b16 %v260, %v256
        %v321 = vpack.c.b16 %v261, %v257
        %v322 = vpack.c.b16 %v262, %v258
        %v323 = vpack.c.b16 %v267, %v263
        %v324 = vpack.c.b16 %v268, %v264
        %v325 = vpack.c.b16 %v269, %v265
        %v326 = vpack.c.b16 %v270, %v266
        %v327 = vpack.c.b16 %v275, %v271
        %v328 = vpack.c.b16 %v276, %v272
        %v329 = vpack.c.b16 %v277, %v273
        %v330 = vpack.c.b16 %v278, %v274
        %v331 = vpack.c.b16 %v283, %v279
        %v332 = vpack.c.b16 %v284, %v280
        %v333 = vpack.c.b16 %v285, %v281
        %v334 = vpack.c.b16 %v286, %v282
        %v335 = vpack.c.b16 %v291, %v287
        %v336 = vpack.c.b16 %v292, %v288
        %v337 = vpack.c.b16 %v293, %v289
        %v338 = vpack.c.b16 %v294, %v290
        %v339 = vpack.c.b16 %v299, %v295
        %v340 = vpack.c.b16 %v300, %v296
        %v341 = vpack.c.b16 %v301, %v297
        %v342 = vpack.c.b16 %v302, %v298
        %v343 = vpack.c.b16 %v307, %v303
        %v344 = vpack.c.b16 %v308, %v304
        %v345 = vpack.c.b16 %v309, %v305
        %v346 = vpack.c.b16 %v310, %v306
        %v347 = vpack.c.b16 %v315, %v311
        %v348 = vpack.c.b16 %v316, %v312
        %v349 = vpack.c.b16 %v317, %v313
        %v350 = vpack.c.b16 %v318, %v314
        %383 = vmatpush.bf16.msra.mxu0 %v347
        %384 = vmatpush.bf16.msra.mxu0 %v343
        %385 = vmatpush.bf16.msra.mxu0 %v339
        %386 = vmatpush.bf16.msra.mxu0 %v335
        %387 = vmatpush.bf16.msra.mxu0 %v331
        %388 = vmatpush.bf16.msra.mxu0 %v327
        %389 = vmatpush.bf16.msra.mxu0 %v323
        %390 = vmatpush.bf16.msra.mxu0 %v319
        %391 = vmatmul.bf16.gmra.mxu0 %v221
        %v392 = vpop.f32.mrf.mxu0
        %v393 = vadd.f32 0.0, %v392
        %v394 = vpop.f32.mrf.mxu0
        %v395 = vadd.f32 0.0, %v394
        %396 = vdwg.mxu0
        %397 = vmatpush.bf16.msra.mxu0 %v348
        %398 = vmatpush.bf16.msra.mxu0 %v344
        %399 = vmatpush.bf16.msra.mxu0 %v340
        %400 = vmatpush.bf16.msra.mxu0 %v336
        %401 = vmatpush.bf16.msra.mxu0 %v332
        %402 = vmatpush.bf16.msra.mxu0 %v328
        %403 = vmatpush.bf16.msra.mxu0 %v324
        %404 = vmatpush.bf16.msra.mxu0 %v320
        %405 = vmatmul.bf16.gmra.mxu0 %v221
        %v406 = vpop.f32.mrf.mxu0
        %v407 = vadd.f32 0.0, %v406
        %v408 = vpop.f32.mrf.mxu0
        %v409 = vadd.f32 0.0, %v408
        %410 = vdwg.mxu0
        %411 = vmatpush.bf16.msra.mxu0 %v349
        %412 = vmatpush.bf16.msra.mxu0 %v345
        %413 = vmatpush.bf16.msra.mxu0 %v341
        %414 = vmatpush.bf16.msra.mxu0 %v337
        %415 = vmatpush.bf16.msra.mxu0 %v333
        %416 = vmatpush.bf16.msra.mxu0 %v329
        %417 = vmatpush.bf16.msra.mxu0 %v325
        %418 = vmatpush.bf16.msra.mxu0 %v321
        %419 = vmatmul.bf16.gmra.mxu0 %v221
        %v420 = vpop.f32.mrf.mxu0
        %v421 = vadd.f32 0.0, %v420
        %v422 = vpop.f32.mrf.mxu0
        %v423 = vadd.f32 0.0, %v422
        %424 = vdwg.mxu0
        %425 = vmatpush.bf16.msra.mxu0 %v350
        %426 = vmatpush.bf16.msra.mxu0 %v346
        %427 = vmatpush.bf16.msra.mxu0 %v342
        %428 = vmatpush.bf16.msra.mxu0 %v338
        %429 = vmatpush.bf16.msra.mxu0 %v334
        %430 = vmatpush.bf16.msra.mxu0 %v330
        %431 = vmatpush.bf16.msra.mxu0 %v326
        %432 = vmatpush.bf16.msra.mxu0 %v322
        %433 = vmatmul.bf16.gmra.mxu0 %v221
        %v434 = vpop.f32.mrf.mxu0
        %v435 = vadd.f32 0.0, %v434
        %v436 = vpop.f32.mrf.mxu0
        %v437 = vadd.f32 0.0, %v436
        %438 = vdwg.mxu0
        %439 = vst [vmem:[%s180] sm:$0xff] %v393
        %440 = vst [vmem:[%s180 + $0x8] sm:$0xff] %v407
        %441 = vst [vmem:[%s180 + $0x10] sm:$0xff] %v421
        %442 = vst [vmem:[%s180 + $0x18] sm:$0xff] %v435
        %443 = vst [vmem:[%s180 + $0x20] sm:$0xff] %v395
        %444 = vst [vmem:[%s180 + $0x28] sm:$0xff] %v409
        %445 = vst [vmem:[%s180 + $0x30] sm:$0xff] %v423
        %446 = vst [vmem:[%s180 + $0x38] sm:$0xff] %v437
        %s447 = sand.u32 %s75, 1
        %s448 = scalar_lea.sflag [#allocation4], %s447
        %s449 = sand.u32 %s75, 1
        %s450 = smul.addr %s449, 64
        %s451 = scalar_lea.vmem [#allocation7], %s450
        // Predicated region
        $region37: #{tpu_custom_call.1} parent=27 // pred_check
          %p452 = pneg %p85
        $region38: #{tpu_custom_call.1} parent=27 // pred_check_branch
          %454 = sbr.rel (%p452) target = $region40
        $region39: #{tpu_custom_call.1} parent=27 // pred_region
          %s455 = smul.u32 4, %s20
          %457 = vsyncadd %s448, 0
          %s458 = smul.addr %s455, 8
          %s459 = scalar_lea.hbm %s2, %s458
          %s460 = sshll.u32 %s451, 4
          %s461 = int_to_ptr.vmem [resolvable:$true] %s460
          %s462 = sshll.u32 %s459, 4
          %s463 = int_to_ptr.hbm [resolvable:$true] %s462
          %468 = dma.vmem_to_hbm [thread:$0]  %s461, 1024, %s463, %s448, 512, 2048, 32
        $region40: #{tpu_custom_call.1} parent=27 // pred_fallthru
          _
      $region28: #{tpu_custom_call.1} parent=5 // pred_fallthru
        _
      %p469 = scmp.le.s32.totalorder 2, %s15
      // Predicated region
      $region41: #{tpu_custom_call.1} parent=5 // pred_check
        %p470 = pneg %p469
      $region42: #{tpu_custom_call.1} parent=5 // pred_check_branch
        %472 = sbr.rel (%p470) target = $region44
      $region43: #{tpu_custom_call.1} parent=5 // pred_region
        %s473 = ssub.s32 %s15, 2
        // Predicated region
        $region45: #{tpu_custom_call.1} parent=43 // pred_check
          %p474 = pneg %p91
        $region46: #{tpu_custom_call.1} parent=43 // pred_check_branch
          %476 = sbr.rel (%p474) target = $region48
        $region47: #{tpu_custom_call.1} parent=43 // pred_region
          %s477 = sand.u32 %s76, 1
          %s478 = scalar_lea.sflag [#allocation4], %s477
          %s479 = sand.u32 %s76, 1
          %s480 = smul.addr %s479, 64
          %s481 = scalar_lea.vmem [#allocation7], %s480
          %483 = dma.done %s478, 1024
        $region48: #{tpu_custom_call.1} parent=43 // pred_fallthru
          _
      $region44: #{tpu_custom_call.1} parent=5 // pred_fallthru
        _
    $region6: #{tpu_custom_call.1} parent=1 // loop_footer
      %s19 = sadd.s32 1, %s15
    $region7: #{tpu_custom_call.1} parent=1 // loop_footer_branch
      %14 = sbr.rel target = $region3
    $region8: #{tpu_custom_call.1} parent=1 // loop_exit
      _
    %484 = vsyncpa [#allocation3], 1
    %s485 = scalar_lea.sflag [#allocation3], 1
    %486 = vsyncpa %s485, 1
    %487 = vsyncpa [#allocation6], 1
    %488 = vsyncpa [#allocation4], 1
    %s489 = scalar_lea.sflag [#allocation4], 1
    %490 = vsyncpa %s489, 1

</llo_original>
